<compile_context>
chip_gen: v7x
topology: tpu7x:2x2x1
jax: 0.10.0
libtpu: 0.0.40
codegen_flags: <defaults>
</compile_context>

<pallas_src>
from functools import partial

import jax
import jax.numpy as jnp
from jax import lax
from jax.experimental import pallas as pl
from jax.experimental.pallas import tpu as pltpu


def _round_up(a, m):
    return ((a + m - 1) // m) * m


def _vmem_capacity_bytes():
    """Per-core VMEM capacity; conservative 64 MiB fallback (v7x size)."""
    try:
        info = pltpu.get_tpu_info()
        cap = getattr(info, "vmem_capacity_bytes", None)
        if cap:
            return int(cap)
    except Exception:
        pass
    return 64 << 20


def _attention_from_pools(avg, mx, w1, w2):
    # fc2(relu(fc1(avg))) + fc2(relu(fc1(max))); branches merged after the ReLU
    # so it is 3 tiny dots, no concat, no lane slicing.
    h = (jnp.maximum(jnp.dot(w1, avg, preferred_element_type=jnp.float32), 0.0)
         + jnp.maximum(jnp.dot(w1, mx, preferred_element_type=jnp.float32), 0.0))
    o = jnp.dot(w2, h, preferred_element_type=jnp.float32)
    return jax.nn.sigmoid(o)                                   # (C, 1)


# ----------------------------------------------------------------------------
# Resident-slab path (bandwidth optimal: 1 read + 1 write of x).
# ----------------------------------------------------------------------------
def _ca_resident_kernel(x_ref, w1_ref, w2_ref, o_ref, att_ref,
                        *, hw, t_hw, n_t):
    # x_ref:   (1, C, HW)   full-HW slab, resident across the HW-tile grid axis
    # w1_ref:  (Cr, C)      w2_ref: (C, Cr)
    # o_ref:   (1, C, t_hw) current lane-dense output tile
    # att_ref: (C, 1) f32 VMEM scratch, persists across grid steps (t axis must
    #          stay sequential / "arbitrary" for this to be valid).
    t = pl.program_id(1)

    @pl.when(t == 0)
    def _():
        x = x_ref[0].astype(jnp.float32)                       # (C, HW) logical
        # The block equals the full array dims, so the compiler masks the
        # unaligned lane tail of these reductions itself -- no iota/where pass
        # over the slab (shrinks the serial t==0 bubble).
        avg = jnp.sum(x, axis=-1, keepdims=True) * (1.0 / hw)  # exact mean
        mx = jnp.max(x, axis=-1, keepdims=True)
        att_ref[...] = _attention_from_pools(avg, mx, w1_ref[...], w2_ref[...])

    att = att_ref[...]                                         # (C, 1)

    if n_t == 1:
        o_ref[0] = (att * x_ref[0]).astype(o_ref.dtype)
        return

    last = n_t - 1
    tail = hw - last * t_hw                                    # static, in (0, t_hw]

    def _scale_full():
        start = pl.multiple_of(t * t_hw, 128)
        o_ref[0] = (att * x_ref[0, :, pl.ds(start, t_hw)]).astype(o_ref.dtype)

    if tail == t_hw:
        _scale_full()                                          # t_hw divides HW
    else:
        pl.when(t < last)(_scale_full)

        @pl.when(t == last)
        def _():
            # Static tail slice: never read past the slab's logical extent; the
            # untouched lanes of the partial output block are masked on store.
            o_ref[0, :, :tail] = (att * x_ref[0, :, last * t_hw:hw]).astype(o_ref.dtype)


# ----------------------------------------------------------------------------
# Two-pass fallback for slabs that do not fit VMEM (extra 0.5x HBM read of x).
# ----------------------------------------------------------------------------
def _ca_pool_kernel(x_ref, w1_ref, w2_ref, att_ref, sum_ref, max_ref,
                    *, hw, t_hw, n_t):
    # x_ref: (1, C, t_hw) streamed tile; att_ref: (1, C, 128) per-batch output.
    t = pl.program_id(1)

    @pl.when(t == 0)
    def _():
        sum_ref[...] = jnp.zeros_like(sum_ref)
        max_ref[...] = jnp.full_like(max_ref, -jnp.inf)

    x = x_ref[0].astype(jnp.float32)                           # (C, t_hw)
    if hw % t_hw != 0:
        # Only tile-sized masking (not full-slab) for the partial tail block.
        lane = lax.broadcasted_iota(jnp.int32, x.shape, 1)
        valid = (t * t_hw + lane) < hw
        xs = jnp.where(valid, x, 0.0)
        xm = jnp.where(valid, x, -jnp.inf)
    else:
        xs, xm = x, x

    sum_ref[...] = sum_ref[...] + jnp.sum(xs, axis=-1, keepdims=True)
    max_ref[...] = jnp.maximum(max_ref[...], jnp.max(xm, axis=-1, keepdims=True))

    @pl.when(t == n_t - 1)
    def _():
        avg = sum_ref[...] * (1.0 / hw)
        att = _attention_from_pools(avg, max_ref[...], w1_ref[...], w2_ref[...])
        att_ref[0] = jnp.broadcast_to(att, att_ref.shape[1:])  # lane-dense store


def _ca_scale_kernel(att_ref, x_ref, o_ref):
    att = att_ref[0, :, :1]                                    # (C, 1)
    o_ref[0] = (att * x_ref[0]).astype(o_ref.dtype)


# ----------------------------------------------------------------------------
# Wrapper
# ----------------------------------------------------------------------------
def channel_attention(x, w1, w2, *, tile_bytes_target=1536 * 1024,
                      t_hw_override=None, force_two_pass=False):
    """ChannelAttention.forward: sigmoid(fc2(relu(fc1(avg)))+fc2(relu(fc1(max)))) * x.

    x: (B, C, H, W); w1: (C//r, C); w2: (C, C//r) (1x1 conv weights, no bias).
    """
    B, C, H, W = x.shape
    Cr = w1.shape[0]
    HW = H * W
    itemsize = jnp.dtype(x.dtype).itemsize
    w_bytes = (w1.size + w2.size) * 4

    # Metadata-only reshape (contiguous dims): no HBM copy, no pad, no crop.
    x_flat = x.reshape(B, C, HW)

    # Lane-dense HW tile sized so the output block is ~1.5 MiB (keeps the
    # ~0.35us/grid-step overhead negligible on large feature maps).
    if t_hw_override is not None:
        t_hw = max(128, _round_up(int(t_hw_override), 128))
    else:
        t_hw = max(128, _round_up(tile_bytes_target // max(1, itemsize * C), 128))
    if t_hw >= HW:
        t_hw, n_t = HW, 1
    else:
        n_t = pl.cdiv(HW, t_hw)

    vmem_budget = int(0.85 * _vmem_capacity_bytes())

    slab_bytes = C * HW * itemsize
    out_tile_bytes = C * t_hw * itemsize
    # Double-buffered slab + double-buffered output tile + weights + scratch + slack.
    resident_need = (2 * slab_bytes + 2 * out_tile_bytes + 2 * w_bytes
                     + (64 << 10) + (2 << 20))
    use_resident = (not force_two_pass) and resident_need <= vmem_budget

    if use_resident:
        kernel = partial(_ca_resident_kernel, hw=HW, t_hw=t_hw, n_t=n_t)
        cost = pl.CostEstimate(
            flops=int(3 * B * C * HW + 8 * B * C * Cr),
            transcendentals=int(B * C),
            bytes_accessed=int(2 * B * C * HW * itemsize + w_bytes),
        )
        out_flat = pl.pallas_call(
            kernel,
            out_shape=jax.ShapeDtypeStruct((B, C, HW), x.dtype),
            grid_spec=pltpu.PrefetchScalarGridSpec(
                num_scalar_prefetch=0,
                grid=(B, n_t),
                in_specs=[
                    # Full-HW input slab, resident across the HW-tile axis.
                    pl.BlockSpec((1, C, HW), lambda b, t: (b, 0, 0)),
                    pl.BlockSpec((Cr, C), lambda b, t: (0, 0)),
                    pl.BlockSpec((C, Cr), lambda b, t: (0, 0)),
                ],
                # Lane-dense output tile, pipelined across the HW axis.
                out_specs=pl.BlockSpec((1, C, t_hw), lambda b, t: (b, 0, t)),
                scratch_shapes=[pltpu.VMEM((C, 1), jnp.float32)],
            ),
            compiler_params=pltpu.CompilerParams(
                dimension_semantics=("parallel", "arbitrary"),
                vmem_limit_bytes=int(min(max(resident_need, 16 << 20), vmem_budget)),
            ),
            cost_estimate=cost,
        )(x_flat, w1, w2)
        return out_flat.reshape(B, C, H, W)

    # ---- Two-pass tiled fallback (slab would not fit VMEM, or forced) -------
    small_limit = int(min(32 << 20, vmem_budget))

    pool_kernel = partial(_ca_pool_kernel, hw=HW, t_hw=t_hw, n_t=n_t)
    att = pl.pallas_call(
        pool_kernel,
        out_shape=jax.ShapeDtypeStruct((B, C, 128), jnp.float32),
        grid_spec=pltpu.PrefetchScalarGridSpec(
            num_scalar_prefetch=0,
            grid=(B, n_t),
            in_specs=[
                pl.BlockSpec((1, C, t_hw), lambda b, t: (b, 0, t)),
                pl.BlockSpec((Cr, C), lambda b, t: (0, 0)),
                pl.BlockSpec((C, Cr), lambda b, t: (0, 0)),
            ],
            out_specs=pl.BlockSpec((1, C, 128), lambda b, t: (b, 0, 0)),
            scratch_shapes=[pltpu.VMEM((C, 1), jnp.float32),
                            pltpu.VMEM((C, 1), jnp.float32)],
        ),
        compiler_params=pltpu.CompilerParams(
            dimension_semantics=("parallel", "arbitrary"),
            vmem_limit_bytes=small_limit,
        ),
        cost_estimate=pl.CostEstimate(
            flops=int(2 * B * C * HW + 8 * B * C * Cr),
            transcendentals=int(B * C),
            bytes_accessed=int(B * C * HW * itemsize + w_bytes + B * C * 128 * 4),
        ),
    )(x_flat, w1, w2)

    out_flat = pl.pallas_call(
        _ca_scale_kernel,
        out_shape=jax.ShapeDtypeStruct((B, C, HW), x.dtype),
        grid_spec=pltpu.PrefetchScalarGridSpec(
            num_scalar_prefetch=0,
            grid=(B, n_t),
            in_specs=[
                pl.BlockSpec((1, C, 128), lambda b, t: (b, 0, 0)),
                pl.BlockSpec((1, C, t_hw), lambda b, t: (b, 0, t)),
            ],
            out_specs=pl.BlockSpec((1, C, t_hw), lambda b, t: (b, 0, t)),
        ),
        compiler_params=pltpu.CompilerParams(
            # Fully data-parallel: both axes can shard across TCs (v7x, B=1).
            dimension_semantics=("parallel", "parallel"),
            vmem_limit_bytes=small_limit,
        ),
        cost_estimate=pl.CostEstimate(
            flops=int(B * C * HW),
            transcendentals=0,
            bytes_accessed=int(2 * B * C * HW * itemsize + B * C * 128 * 4),
        ),
    )(att, x_flat)
    return out_flat.reshape(B, C, H, W)


def channel_attention_ref(x, w1, w2):
    # Pure-JAX reference matching the PyTorch ChannelAttention.forward.
    avg = jnp.mean(x, axis=(2, 3))                   # (B, C)
    mx = jnp.max(x, axis=(2, 3))                     # (B, C)

    def branch(p):                                   # p: (B, C)
        h = jnp.maximum(p @ w1.T, 0.0)               # (B, Cr)
        return h @ w2.T                              # (B, C)

    out = branch(avg) + branch(mx)                   # (B, C)
    att = jax.nn.sigmoid(out)[:, :, None, None]      # (B, C, 1, 1)
    return att * x


if __name__ == "__main__":
    C = 16
    ratio = 8
    Cr = C // ratio

    key = jax.random.PRNGKey(0)
    kx, k1, k2, kx2 = jax.random.split(key, 4)
    # 1x1 Conv2d (no bias) weights as (out, in) matrices.
    w1 = jax.random.normal(k1, (Cr, C), dtype=jnp.float32) * 0.1
    w2 = jax.random.normal(k2, (C, Cr), dtype=jnp.float32) * 0.1

    # Case 1: small aligned shape, single-tile resident path.
    x = jax.random.normal(kx, (2, C, 16, 16), dtype=jnp.float32)
    out = jax.block_until_ready(channel_attention(x, w1, w2))
    ref = channel_attention_ref(x, w1, w2)
    assert jnp.allclose(out, ref, atol=1e-5, rtol=1e-5), "mismatch vs reference (case 1)"

    # Case 2: unaligned HW (36*36 = 1296), single-tile resident path
    # (compiler-masked reductions over the unaligned lane tail, no wrapper pad).
    x2 = jax.random.normal(kx2, (2, C, 36, 36), dtype=jnp.float32)
    ref2 = channel_attention_ref(x2, w1, w2)
    out2 = jax.block_until_ready(channel_attention(x2, w1, w2))
    assert jnp.allclose(out2, ref2, atol=1e-5, rtol=1e-5), "mismatch vs reference (case 2)"

    # Case 3: force the multi-tile resident path with a partial tail tile
    # (t_hw=512 -> 3 tiles per batch, tail of 272 lanes).
    out3 = jax.block_until_ready(channel_attention(x2, w1, w2, t_hw_override=512))
    assert jnp.allclose(out3, ref2, atol=1e-5, rtol=1e-5), "mismatch vs reference (case 3)"

    # Case 4: force the two-pass tiled fallback (used when the slab exceeds VMEM).
    out4 = jax.block_until_ready(
        channel_attention(x2, w1, w2, t_hw_override=512, force_two_pass=True))
    assert jnp.allclose(out4, ref2, atol=1e-5, rtol=1e-5), "mismatch vs reference (case 4)"

    print("KERNEL_OK")
</pallas_src>

<mosaic_0001>
module attributes {stable_mosaic.version = 11 : i64} {
  func.func @_ca_resident_kernel(%arg0: i32, %arg1: i32, %arg2: memref<1x16x256xf32, #tpu.memory_space<vmem>>, %arg3: memref<2x16xf32, #tpu.memory_space<vmem>>, %arg4: memref<16x2xf32, #tpu.memory_space<vmem>>, %arg5: memref<1x16x256xf32, #tpu.memory_space<vmem>>, %arg6: memref<16x1xf32, #tpu.memory_space<vmem>>) attributes {dimension_semantics = [#tpu.dimension_semantics<parallel>, #tpu.dimension_semantics<arbitrary>], iteration_bounds = array<i64: 2, 1>, scalar_prefetch = 0 : i64, scratch_operands = 1 : i64, tpu.core_type = #tpu.core_type<tc>, window_params = [{transform_indices = @transform_0, window_bounds = array<i64: 1, 16, 256>}, {pipeline_mode = #tpu.pipeline_mode<synchronous>, transform_indices = @transform_1, window_bounds = array<i64: 2, 16>}, {pipeline_mode = #tpu.pipeline_mode<synchronous>, transform_indices = @transform_2, window_bounds = array<i64: 16, 2>}, {transform_indices = @transform_3, window_bounds = array<i64: 1, 16, 256>}]} {
    %c0_i32 = arith.constant 0 : i32
    %0 = arith.cmpi eq, %arg1, %c0_i32 : i32
    %1 = arith.extui %0 : i1 to i32
    %c0_i32_0 = arith.constant 0 : i32
    %2 = arith.cmpi ne, %1, %c0_i32_0 : i32
    scf.if %2 {
      %c0_8 = arith.constant 0 : index
      %c0_9 = arith.constant 0 : index
      %c0_10 = arith.constant 0 : index
      %11 = vector.load %arg2[%c0_8, %c0_9, %c0_10] : memref<1x16x256xf32, #tpu.memory_space<vmem>>, vector<1x16x256xf32>
      %12 = vector.shape_cast %11 : vector<1x16x256xf32> to vector<16x256xf32>
      %cst = arith.constant dense<0.000000e+00> : vector<16xf32>
      %13 = vector.multi_reduction <add>, %12, %cst [1] : vector<16x256xf32> to vector<16xf32>
      %14 = vector.shape_cast %13 : vector<16xf32> to vector<16x1xf32>
      %cst_11 = arith.constant 3.906250e-03 : f32
      %15 = vector.broadcast %cst_11 : f32 to vector<16x1xf32>
      %16 = arith.mulf %14, %15 : vector<16x1xf32>
      %cst_12 = arith.constant dense<0xFF800000> : vector<16xf32>
      %17 = vector.multi_reduction <maximumf>, %12, %cst_12 [1] : vector<16x256xf32> to vector<16xf32>
      %18 = vector.shape_cast %17 : vector<16xf32> to vector<16x1xf32>
      %c0_13 = arith.constant 0 : index
      %c0_14 = arith.constant 0 : index
      %19 = vector.load %arg3[%c0_13, %c0_14] : memref<2x16xf32, #tpu.memory_space<vmem>>, vector<2x16xf32>
      %c0_15 = arith.constant 0 : index
      %c0_16 = arith.constant 0 : index
      %20 = vector.load %arg4[%c0_15, %c0_16] : memref<16x2xf32, #tpu.memory_space<vmem>>, vector<16x2xf32>
      %cst_17 = arith.constant dense<0.000000e+00> : vector<2x1xf32>
      %21 = tpu.matmul %19, %16, %cst_17 {dimension_numbers = #tpu.dot_dimension_numbers<[1], [0], [0], [1], [0, 0, 1, 1], [], []>} : vector<2x16xf32>, vector<16x1xf32>, vector<2x1xf32> -> vector<2x1xf32>
      %cst_18 = arith.constant 0.000000e+00 : f32
      %22 = vector.broadcast %cst_18 : f32 to vector<2x1xf32>
      %23 = arith.maximumf %21, %22 : vector<2x1xf32>
      %cst_19 = arith.constant dense<0.000000e+00> : vector<2x1xf32>
      %24 = tpu.matmul %19, %18, %cst_19 {dimension_numbers = #tpu.dot_dimension_numbers<[1], [0], [0], [1], [0, 0, 1, 1], [], []>} : vector<2x16xf32>, vector<16x1xf32>, vector<2x1xf32> -> vector<2x1xf32>
      %cst_20 = arith.constant 0.000000e+00 : f32
      %25 = vector.broadcast %cst_20 : f32 to vector<2x1xf32>
      %26 = arith.maximumf %24, %25 : vector<2x1xf32>
      %27 = arith.addf %23, %26 : vector<2x1xf32>
      %cst_21 = arith.constant dense<0.000000e+00> : vector<16x1xf32>
      %28 = tpu.matmul %20, %27, %cst_21 {dimension_numbers = #tpu.dot_dimension_numbers<[1], [0], [0], [1], [0, 0, 1, 1], [], []>} : vector<16x2xf32>, vector<2x1xf32>, vector<16x1xf32> -> vector<16x1xf32>
      %29 = arith.negf %28 : vector<16x1xf32>
      %30 = math.exp %29 : vector<16x1xf32>
      %cst_22 = arith.constant 1.000000e+00 : f32
      %31 = vector.broadcast %cst_22 : f32 to vector<16x1xf32>
      %32 = arith.addf %31, %30 : vector<16x1xf32>
      %33 = arith.divf %31, %32 : vector<16x1xf32>
      %c0_23 = arith.constant 0 : index
      %c0_24 = arith.constant 0 : index
      %34 = vector.load %arg6[%c0_23, %c0_24] : memref<16x1xf32, #tpu.memory_space<vmem>>, vector<16x1xf32>
      tpu.vector_store %arg6[%c0_23, %c0_24], %33 {strides = array<i32>} : memref<16x1xf32, #tpu.memory_space<vmem>>, vector<16x1xf32>,
    } else {
    }
    %c0 = arith.constant 0 : index
    %c0_1 = arith.constant 0 : index
    %3 = vector.load %arg6[%c0, %c0_1] : memref<16x1xf32, #tpu.memory_space<vmem>>, vector<16x1xf32>
    %c0_2 = arith.constant 0 : index
    %c0_3 = arith.constant 0 : index
    %c0_4 = arith.constant 0 : index
    %4 = vector.load %arg2[%c0_2, %c0_3, %c0_4] : memref<1x16x256xf32, #tpu.memory_space<vmem>>, vector<1x16x256xf32>
    %5 = vector.shape_cast %4 : vector<1x16x256xf32> to vector<16x256xf32>
    %6 = vector.broadcast %3 : vector<16x1xf32> to vector<16x256xf32>
    %7 = arith.mulf %6, %5 : vector<16x256xf32>
    %c0_5 = arith.constant 0 : index
    %c0_6 = arith.constant 0 : index
    %c0_7 = arith.constant 0 : index
    %8 = vector.load %arg5[%c0_5, %c0_6, %c0_7] : memref<1x16x256xf32, #tpu.memory_space<vmem>>, vector<1x16x256xf32>
    %9 = vector.shape_cast %8 : vector<1x16x256xf32> to vector<16x256xf32>
    %10 = vector.shape_cast %7 : vector<16x256xf32> to vector<1x16x256xf32>
    tpu.vector_store %arg5[%c0_5, %c0_6, %c0_7], %10 {strides = array<i32>} : memref<1x16x256xf32, #tpu.memory_space<vmem>>, vector<1x16x256xf32>,
    return
  }
  func.func @transform_0(%arg0: i32, %arg1: i32) -> (i32, i32, i32) {
    %c0_i32 = arith.constant 0 : i32
    %c0_i32_0 = arith.constant 0 : i32
    %c0_i32_1 = arith.constant 0 : i32
    return %arg0, %c0_i32, %c0_i32_0 : i32, i32, i32
  }
  func.func @transform_1(%arg0: i32, %arg1: i32) -> (i32, i32) {
    %c0_i32 = arith.constant 0 : i32
    %c0_i32_0 = arith.constant 0 : i32
    %c0_i32_1 = arith.constant 0 : i32
    return %c0_i32, %c0_i32_0 : i32, i32
  }
  func.func @transform_2(%arg0: i32, %arg1: i32) -> (i32, i32) {
    %c0_i32 = arith.constant 0 : i32
    %c0_i32_0 = arith.constant 0 : i32
    %c0_i32_1 = arith.constant 0 : i32
    return %c0_i32, %c0_i32_0 : i32, i32
  }
  func.func @transform_3(%arg0: i32, %arg1: i32) -> (i32, i32, i32) {
    %c0_i32 = arith.constant 0 : i32
    %c0_i32_0 = arith.constant 0 : i32
    return %arg0, %c0_i32, %arg1 : i32, i32, i32
  }
}

</mosaic_0001>

<llo_original>
// kernel: tpu_custom_call.1
$region0: #{tpu_custom_call.1}
  #allocation0 [shape = 'u32[]', space=smem, size = 0x4, offset = 0x4, fixed_abs, tag = 'smem constant byte address 0x4 - core index']
  #allocation1 [shape = 'u32[144,128]{1,0:T(1,128)}', space=vmem, size = 0x12000, scoped, tag = 'internal scratch']
  #allocation2 [shape = 'f32[16,1]{1,0:T(8,128)}', space=vmem, size = 0x2000, scoped, tag = 'scratch operand']
  %s0 = inlined_call_operand.hbm [shape: f32[2,16,256], index: 0, kind: input, shape index: {}]
  %s1 = inlined_call_operand.vmem [shape: f32[2,16], index: 1, kind: input, shape index: {}]
  %s2 = inlined_call_operand.vmem [shape: f32[16,2], index: 2, kind: input, shape index: {}]
  %s3 = inlined_call_operand.hbm [shape: f32[2,16,256], index: 3, kind: output, shape index: {}]
  %s4 = sld [smem:[#allocation0]]
  $region53: #{tpu_custom_call.1} parent=0
    _
  %s6 = ssub.s32 1, %s4
  %s7 = scalar_select 0, %s6, %s4
  $region1: #{tpu_custom_call.1} parent=0
    #allocation3 [shape = 'u8[32768]{0}', space=vmem, size = 0x8000, scoped, tag = 'input window, operand 0']
    #allocation4 [shape = 's32[2]{0}', space=sflag, size = 0x8, scoped, tag = 'scoped memory for tpu_custom_call.1']
    #allocation5 [shape = 's32[2]{0}', space=sflag, size = 0x8, scoped, tag = 'scoped memory for tpu_custom_call.1']
    #allocation6 [shape = 'u8[32768]{0}', space=vmem, size = 0x8000, scoped, tag = 'output window, operand 0']
    %8 = vsyncpa [#allocation4], 0
    %s9 = scalar_lea.sflag [#allocation4], 1
    %10 = vsyncpa %s9, 0
    %11 = vsyncpa [#allocation5], 0
    %s12 = scalar_lea.sflag [#allocation5], 1
    %13 = vsyncpa %s12, 0
    loop: start=0, step=1, limit=4
    $region2: #{tpu_custom_call.1} parent=1 // loop_pre_header
      _
    $region3: #{tpu_custom_call.1} parent=1 // loop_header
      %s15 = sphi 0, %s19
      %p16 = scmp.ge.s32.totalorder %s15, 4
      %s22 = sphi 0, %s34
      %s23 = sphi 0, %s30
      %s24 = sphi 0, %s22
      %s25 = sphi 0, %s23
      %s26 = sphi 0, %s24
      %s27 = sphi 0, %s25
      %s37 = sphi 0, %s39
      %s40 = sphi 0, %s37
      %s41 = sphi 0, %s40
      %s57 = sphi 0, %s41
      %s61 = sphi 0, %s61
      %s63 = sphi 0, %s61
      %s64 = sphi 0, %s63
      %s78 = sphi 0, %s64
      %s82 = sphi 0, %s82
      %s84 = sphi 0, %s82
      %s85 = sphi 0, %s84
      %s99 = sphi 0, %s85
      %s107 = sphi 0, %s109
      %s110 = sphi 0, %s107
      %s111 = sphi 0, %s110
      %s127 = sphi 0, %s111
    $region4: #{tpu_custom_call.1} parent=1 // loop_header_branch
      %18 = sbr.rel (%p16) target = $region8
    $region5: #{tpu_custom_call.1} parent=1 // loop_body
      %s20 = ssub.s32 %s15, 1
      %s21 = ssub.s32 %s15, 2
      %s28 = sadd.s32 1, %s23
      %p29 = scmp.ge.s32.totalorder %s28, 1
      %s30 = scalar_select %p29, 0, %s28
      %s31 = sadd.s32 1, %s22
      %s32 = scalar_select %p29, %s31, %s22
      %p33 = scmp.ge.s32.totalorder %s32, 2
      %s34 = scalar_select %p33, 0, %s32
      %s35 = ssub.s32 %s22, %s34
      %p36 = scmp.eq.s32.totalorder %s35, 0
      %s38 = sadd.s32 %s37, 1
      %s39 = scalar_select %p36, %s37, %s38
      %p42 = pneg %p36
      %p43 = scmp.eq.s32.totalorder %s15, 1
      %p44 = por %p42, %p43
      %p45 = scmp.ne.s32.totalorder %s37, %s40
      %p46 = scmp.eq.s32.totalorder %s15, 0
      %p47 = por %p45, %p46
      %p48 = scmp.ne.s32.totalorder %s37, %s40
      %p49 = scmp.eq.s32.totalorder %s20, 1
      %p50 = por %p48, %p49
      %p51 = scmp.ne.s32.totalorder %s40, %s41
      %p52 = scmp.eq.s32.totalorder %s20, 0
      %p53 = por %p51, %p52
      %p54 = scmp.ne.s32.totalorder %s40, %s41
      %p55 = scmp.eq.s32.totalorder %s21, 1
      %p56 = por %p54, %p55
      %p58 = scmp.ne.s32.totalorder %s41, %s57
      %p59 = scmp.eq.s32.totalorder %s21, 0
      %p60 = por %p58, %p59
      %s62 = sadd.s32 %s61, 1
      %p65 = scmp.eq.s32.totalorder %s15, 1
      %p66 = scmp.ne.s32.totalorder %s61, %s63
      %p67 = scmp.eq.s32.totalorder %s15, 0
      %p68 = por %p66, %p67
      %p69 = scmp.ne.s32.totalorder %s61, %s63
      %p70 = scmp.eq.s32.totalorder %s20, 1
      %p71 = por %p69, %p70
      %p72 = scmp.ne.s32.totalorder %s63, %s64
      %p73 = scmp.eq.s32.totalorder %s20, 0
      %p74 = por %p72, %p73
      %p75 = scmp.ne.s32.totalorder %s63, %s64
      %p76 = scmp.eq.s32.totalorder %s21, 1
      %p77 = por %p75, %p76
      %p79 = scmp.ne.s32.totalorder %s64, %s78
      %p80 = scmp.eq.s32.totalorder %s21, 0
      %p81 = por %p79, %p80
      %s83 = sadd.s32 %s82, 1
      %p86 = scmp.eq.s32.totalorder %s15, 1
      %p87 = scmp.ne.s32.totalorder %s82, %s84
      %p88 = scmp.eq.s32.totalorder %s15, 0
      %p89 = por %p87, %p88
      %p90 = scmp.ne.s32.totalorder %s82, %s84
      %p91 = scmp.eq.s32.totalorder %s20, 1
      %p92 = por %p90, %p91
      %p93 = scmp.ne.s32.totalorder %s84, %s85
      %p94 = scmp.eq.s32.totalorder %s20, 0
      %p95 = por %p93, %p94
      %p96 = scmp.ne.s32.totalorder %s84, %s85
      %p97 = scmp.eq.s32.totalorder %s21, 1
      %p98 = por %p96, %p97
      %p100 = scmp.ne.s32.totalorder %s85, %s99
      %p101 = scmp.eq.s32.totalorder %s21, 0
      %p102 = por %p100, %p101
      %s103 = ssub.s32 %s22, %s34
      %s104 = ssub.s32 %s23, %s30
      %s105 = sor.u32 %s103, %s104
      %p106 = scmp.eq.s32.totalorder %s105, 0
      %s108 = sadd.s32 %s107, 1
      %s109 = scalar_select %p106, %s107, %s108
      %p112 = pneg %p106
      %p113 = scmp.eq.s32.totalorder %s15, 1
      %p114 = por %p112, %p113
      %p115 = scmp.ne.s32.totalorder %s107, %s110
      %p116 = scmp.eq.s32.totalorder %s15, 0
      %p117 = por %p115, %p116
      %p118 = scmp.ne.s32.totalorder %s107, %s110
      %p119 = scmp.eq.s32.totalorder %s20, 1
      %p120 = por %p118, %p119
      %p121 = scmp.ne.s32.totalorder %s110, %s111
      %p122 = scmp.eq.s32.totalorder %s20, 0
      %p123 = por %p121, %p122
      %p124 = scmp.ne.s32.totalorder %s110, %s111
      %p125 = scmp.eq.s32.totalorder %s21, 1
      %p126 = por %p124, %p125
      %p128 = scmp.ne.s32.totalorder %s111, %s127
      %p129 = scmp.eq.s32.totalorder %s21, 0
      %p130 = por %p128, %p129
      %p131 = scmp.le.s32.totalorder 1, %s15
      %p132 = scmp.lt.s32.totalorder %s15, 3
      %p133 = pnand %p131, %p132
      %p134 = pneg %p133
      // Predicated region
      $region9: #{tpu_custom_call.1} parent=5 // pred_check
        _
      $region10: #{tpu_custom_call.1} parent=5 // pred_check_branch
        %136 = sbr.rel (%p133) target = $region12
      $region11: #{tpu_custom_call.1} parent=5 // pred_region
        %s137 = ssub.s32 %s15, 1
        // Predicated region
        $region13: #{tpu_custom_call.1} parent=11 // pred_check
          %p138 = pneg %p74
        $region14: #{tpu_custom_call.1} parent=11 // pred_check_branch
          %140 = sbr.rel (%p138) target = $region16
        $region15: #{tpu_custom_call.1} parent=11 // pred_region
          _
        $region16: #{tpu_custom_call.1} parent=11 // pred_fallthru
          _
        // Predicated region
        $region17: #{tpu_custom_call.1} parent=11 // pred_check
          %p141 = pneg %p95
        $region18: #{tpu_custom_call.1} parent=11 // pred_check_branch
          %143 = sbr.rel (%p141) target = $region20
        $region19: #{tpu_custom_call.1} parent=11 // pred_region
          _
        $region20: #{tpu_custom_call.1} parent=11 // pred_fallthru
          _
      $region12: #{tpu_custom_call.1} parent=5 // pred_fallthru
        _
      %p144 = scmp.lt.s32.totalorder %s15, 2
      // Predicated region
      $region21: #{tpu_custom_call.1} parent=5 // pred_check
        %p145 = pneg %p144
      $region22: #{tpu_custom_call.1} parent=5 // pred_check_branch
        %147 = sbr.rel (%p145) target = $region24
      $region23: #{tpu_custom_call.1} parent=5 // pred_region
        // Predicated region
        $region25: #{tpu_custom_call.1} parent=23 // pred_check
          %p148 = pneg %p47
        $region26: #{tpu_custom_call.1} parent=23 // pred_check_branch
          %150 = sbr.rel (%p148) target = $region28
        $region27: #{tpu_custom_call.1} parent=23 // pred_region
          %s151 = sand.u32 %s37, 1
          %s152 = scalar_lea.sflag [#allocation4], %s151
          %s153 = sand.u32 %s37, 1
          %s154 = smul.addr %s153, 32
          %s155 = scalar_lea.vmem [#allocation3], %s154
          %s157 = ssub.s32 512, 512
          %158 = vsyncadd %s152, %s157
          %s159 = smul.addr %s22, 4
          %s160 = smul.addr %s159, 128
          %s161 = scalar_lea.hbm %s0, %s160
          %s162 = sshll.u32 %s155, 4
          %s163 = int_to_ptr.vmem [resolvable:$true] %s162
          %168 = dma.hbm_to_vmem [thread:$0]  %s161, 512, %s163, %s152, 256, 256, 16
        $region28: #{tpu_custom_call.1} parent=23 // pred_fallthru
          _
      $region24: #{tpu_custom_call.1} parent=5 // pred_fallthru
        _
      %p169 = scmp.le.s32.totalorder 1, %s15
      %p170 = scmp.lt.s32.totalorder %s15, 3
      %p171 = pnand %p169, %p170
      %p172 = pneg %p171
      // Predicated region
      $region29: #{tpu_custom_call.1} parent=5 // pred_check
        _
      $region30: #{tpu_custom_call.1} parent=5 // pred_check_branch
        %174 = sbr.rel (%p171) target = $region32
      $region31: #{tpu_custom_call.1} parent=5 // pred_region
        %s175 = ssub.s32 %s15, 1
        %s176 = sand.u32 %s40, 1
        %s177 = scalar_lea.sflag [#allocation4], %s176
        %s178 = sand.u32 %s40, 1
        %s179 = smul.addr %s178, 32
        %s180 = scalar_lea.vmem [#allocation3], %s179
        // Predicated region
        $region33: #{tpu_custom_call.1} parent=31 // pred_check
          %p181 = pneg %p53
        $region34: #{tpu_custom_call.1} parent=31 // pred_check_branch
          %183 = sbr.rel (%p181) target = $region36
        $region35: #{tpu_custom_call.1} parent=31 // pred_region
          %184 = dma.done %s177, 512
        $region36: #{tpu_custom_call.1} parent=31 // pred_fallthru
          _
        %s185 = sand.u32 %s40, 1
        %s186 = scalar_lea.sflag [#allocation4], %s185
        %s187 = sand.u32 %s40, 1
        %s188 = smul.addr %s187, 32
        %s189 = scalar_lea.vmem [#allocation3], %s188
        %p190 = pneg %p53
        %p191 = pneg %p50
        %p192 = pneg %p74
        %p193 = pneg %p71
        %p194 = pneg %p95
        %p195 = pneg %p92
        %p196 = pneg %p123
        %p197 = pneg %p120
        %s198 = sand.u32 %s110, 1
        %s199 = scalar_lea.sflag [#allocation5], %s198
        %s200 = sand.u32 %s110, 1
        %s201 = smul.addr %s200, 32
        %s202 = scalar_lea.vmem [#allocation6], %s201
        %s203 = smul.u32 2, %s25
        %p204 = scmp.eq.s32.totalorder %s25, 0
        // Predicated region
        $region37: #{tpu_custom_call.1} parent=31 // pred_check
          %p205 = pneg %p204
        $region38: #{tpu_custom_call.1} parent=31 // pred_check_branch
          %207 = sbr.rel (%p205) target = $region40
        $region39: #{tpu_custom_call.1} parent=31 // pred_region
          %v208 = vld [vmem:[%s180] sm:$0xff]
          %v209 = vld [vmem:[%s180 + $0x8] sm:$0xff]
          %v210 = vld [vmem:[%s180 + $0x10] sm:$0xff]
          %v211 = vld [vmem:[%s180 + $0x18] sm:$0xff]
          %v212 = vadd.f32 %v208, %v209
          %213 = vadd.xlane.f32.xlu0 %v212
          %v214 = vpop.xlane.xlu0 %213
          %v215 = vadd.f32 %v210, %v211
          %216 = vadd.xlane.f32.xlu0 %v215
          %v217 = vpop.xlane.xlu0 %216
          %v218 = vmul.f32 %v214, 0.00390625
          %v219 = vmul.f32 %v217, 0.00390625
          %v220 = vmax.f32 %v208, %v209
          %221 = vmax.xlane.f32.xlu0 %v220
          %v222 = vpop.xlane.xlu0 %221
          %v223 = vmax.f32 %v210, %v211
          %224 = vmax.xlane.f32.xlu0 %v223
          %v225 = vpop.xlane.xlu0 %224
          %v226 = vld [vmem:[%s1] sm:$0x3]
          %v227 = vld [vmem:[%s2] sm:$0xff]
          %v228 = vld [vmem:[%s2 + $0x8] sm:$0xff]
          %vm229 = vcmask 130048
          %v231 = vsel %vm229, %v226, 0
          %233 = vmatprep.subr.mxu0 0.0
          %234 = vmatpush1.msra.mxu0 %v218
          %235 = vmatprep.subr.mxu0 0.0
          %236 = vmatpush1.msra.mxu0 %v219
          %237 = vmatprep.subr.mxu0 0.0
          %238 = vmatpush1.msra.mxu0 0.0
          %239 = vmatprep.subr.mxu0 0.0
          %240 = vmatpush1.msra.mxu0 0.0
          %241 = vmatprep.subr.mxu0 0.0
          %242 = vmatpush1.msra.mxu0 0.0
          %243 = vmatprep.subr.mxu0 0.0
          %244 = vmatpush1.msra.mxu0 0.0
          %245 = vmatprep.subr.mxu0 0.0
          %246 = vmatpush1.msra.mxu0 0.0
          %247 = vmatprep.subr.mxu0 0.0
          %248 = vmatpush1.msra.mxu0 0.0
          %249 = vmatprep.subr.mxu0 0.0
          %250 = vmatpush1.msra.mxu0 0.0
          %251 = vmatprep.subr.mxu0 0.0
          %252 = vmatpush1.msra.mxu0 0.0
          %253 = vmatprep.subr.mxu0 0.0
          %254 = vmatpush1.msra.mxu0 0.0
          %255 = vmatprep.subr.mxu0 0.0
          %256 = vmatpush1.msra.mxu0 0.0
          %257 = vmatprep.subr.mxu0 0.0
          %258 = vmatpush1.msra.mxu0 0.0
          %259 = vmatprep.subr.mxu0 0.0
          %260 = vmatpush1.msra.mxu0 0.0
          %261 = vmatprep.subr.mxu0 0.0
          %262 = vmatpush1.msra.mxu0 0.0
          %263 = vmatprep.subr.mxu0 0.0
          %264 = vmatpush1.msra.mxu0 0.0
          %265 = vmatprep.subr.mxu0 0.0
          %266 = vmatpush1.msra.mxu0 0.0
          %267 = vmatprep.subr.mxu0 0.0
          %268 = vmatpush1.msra.mxu0 0.0
          %269 = vmatprep.subr.mxu0 0.0
          %270 = vmatpush1.msra.mxu0 0.0
          %271 = vmatprep.subr.mxu0 0.0
          %272 = vmatpush1.msra.mxu0 0.0
          %273 = vmatprep.subr.mxu0 0.0
          %274 = vmatpush1.msra.mxu0 0.0
          %275 = vmatprep.subr.mxu0 0.0
          %276 = vmatpush1.msra.mxu0 0.0
          %277 = vmatprep.subr.mxu0 0.0
          %278 = vmatpush1.msra.mxu0 0.0
          %279 = vmatprep.subr.mxu0 0.0
          %280 = vmatpush1.msra.mxu0 0.0
          %281 = vmatprep.subr.mxu0 0.0
          %282 = vmatpush1.msra.mxu0 0.0
          %283 = vmatprep.subr.mxu0 0.0
          %284 = vmatpush1.msra.mxu0 0.0
          %285 = vmatprep.subr.mxu0 0.0
          %286 = vmatpush1.msra.mxu0 0.0
          %287 = vmatprep.subr.mxu0 0.0
          %288 = vmatpush1.msra.mxu0 0.0
          %289 = vmatprep.subr.mxu0 0.0
          %290 = vmatpush1.msra.mxu0 0.0
          %291 = vmatprep.subr.mxu0 0.0
          %292 = vmatpush1.msra.mxu0 0.0
          %293 = vmatprep.subr.mxu0 0.0
          %294 = vmatpush1.msra.mxu0 0.0
          %295 = vmatprep.subr.mxu0 0.0
          %296 = vmatpush1.msra.mxu0 0.0
          %297 = vmatprep.mubr.f32.mxu0 0.0
          %298 = vmatmul.mubr.f32.gmra.mrb[0].mxu0 %v231
          %v299 = vpop.f32.mrb[0].mxu0
          %v300 = vadd.f32 0.0, %v299
          %v301 = vpop.f32.mrb[0].mxu0
          %302 = vdwg.mxu0
          %v303 = vmax.f32 %v300, 0.0
          %304 = vmatprep.subr.mxu0 0.0
          %305 = vmatpush1.msra.mxu0 %v222
          %306 = vmatprep.subr.mxu0 0.0
          %307 = vmatpush1.msra.mxu0 %v225
          %308 = vmatprep.subr.mxu0 0.0
          %309 = vmatpush1.msra.mxu0 0.0
          %310 = vmatprep.subr.mxu0 0.0
          %311 = vmatpush1.msra.mxu0 0.0
          %312 = vmatprep.subr.mxu0 0.0
          %313 = vmatpush1.msra.mxu0 0.0
          %314 = vmatprep.subr.mxu0 0.0
          %315 = vmatpush1.msra.mxu0 0.0
          %316 = vmatprep.subr.mxu0 0.0
          %317 = vmatpush1.msra.mxu0 0.0
          %318 = vmatprep.subr.mxu0 0.0
          %319 = vmatpush1.msra.mxu0 0.0
          %320 = vmatprep.subr.mxu0 0.0
          %321 = vmatpush1.msra.mxu0 0.0
          %322 = vmatprep.subr.mxu0 0.0
          %323 = vmatpush1.msra.mxu0 0.0
          %324 = vmatprep.subr.mxu0 0.0
          %325 = vmatpush1.msra.mxu0 0.0
          %326 = vmatprep.subr.mxu0 0.0
          %327 = vmatpush1.msra.mxu0 0.0
          %328 = vmatprep.subr.mxu0 0.0
          %329 = vmatpush1.msra.mxu0 0.0
          %330 = vmatprep.subr.mxu0 0.0
          %331 = vmatpush1.msra.mxu0 0.0
          %332 = vmatprep.subr.mxu0 0.0
          %333 = vmatpush1.msra.mxu0 0.0
          %334 = vmatprep.subr.mxu0 0.0
          %335 = vmatpush1.msra.mxu0 0.0
          %336 = vmatprep.subr.mxu0 0.0
          %337 = vmatpush1.msra.mxu0 0.0
          %338 = vmatprep.subr.mxu0 0.0
          %339 = vmatpush1.msra.mxu0 0.0
          %340 = vmatprep.subr.mxu0 0.0
          %341 = vmatpush1.msra.mxu0 0.0
          %342 = vmatprep.subr.mxu0 0.0
          %343 = vmatpush1.msra.mxu0 0.0
          %344 = vmatprep.subr.mxu0 0.0
          %345 = vmatpush1.msra.mxu0 0.0
          %346 = vmatprep.subr.mxu0 0.0
          %347 = vmatpush1.msra.mxu0 0.0
          %348 = vmatprep.subr.mxu0 0.0
          %349 = vmatpush1.msra.mxu0 0.0
          %350 = vmatprep.subr.mxu0 0.0
          %351 = vmatpush1.msra.mxu0 0.0
          %352 = vmatprep.subr.mxu0 0.0
          %353 = vmatpush1.msra.mxu0 0.0
          %354 = vmatprep.subr.mxu0 0.0
          %355 = vmatpush1.msra.mxu0 0.0
          %356 = vmatprep.subr.mxu0 0.0
          %357 = vmatpush1.msra.mxu0 0.0
          %358 = vmatprep.subr.mxu0 0.0
          %359 = vmatpush1.msra.mxu0 0.0
          %360 = vmatprep.subr.mxu0 0.0
          %361 = vmatpush1.msra.mxu0 0.0
          %362 = vmatprep.subr.mxu0 0.0
          %363 = vmatpush1.msra.mxu0 0.0
          %364 = vmatprep.subr.mxu0 0.0
          %365 = vmatpush1.msra.mxu0 0.0
          %366 = vmatprep.subr.mxu0 0.0
          %367 = vmatpush1.msra.mxu0 0.0
          %368 = vmatprep.mubr.f32.mxu0 0.0
          %369 = vmatmul.mubr.f32.gmra.mrb[0].mxu0 %v231
          %v370 = vpop.f32.mrb[0].mxu0
          %v371 = vadd.f32 0.0, %v370
          %v372 = vpop.f32.mrb[0].mxu0
          %373 = vdwg.mxu0
          %v374 = vmax.f32 %v371, 0.0
          %v375 = vadd.f32 %v303, %v374
          %vm376 = vcmask 15360
          %v378 = vsel %vm376, %v227, 0
          %v381 = vsel %vm376, %v228, 0
          %vm383 = vcmask 1041408
          %v385 = vsel %vm383, %v375, 0
          %387 = vmatprep.subr.mxu0 0.0
          %388 = vmatpush1.msra.mxu0 %v385
          %389 = vmatprep.subr.mxu0 0.0
          %390 = vmatpush1.msra.mxu0 0.0
          %391 = vmatprep.subr.mxu0 0.0
          %392 = vmatpush1.msra.mxu0 0.0
          %393 = vmatprep.subr.mxu0 0.0
          %394 = vmatpush1.msra.mxu0 0.0
          %395 = vmatprep.subr.mxu0 0.0
          %396 = vmatpush1.msra.mxu0 0.0
          %397 = vmatprep.subr.mxu0 0.0
          %398 = vmatpush1.msra.mxu0 0.0
          %399 = vmatprep.subr.mxu0 0.0
          %400 = vmatpush1.msra.mxu0 0.0
          %401 = vmatprep.subr.mxu0 0.0
          %402 = vmatpush1.msra.mxu0 0.0
          %403 = vmatprep.subr.mxu0 0.0
          %404 = vmatpush1.msra.mxu0 0.0
          %405 = vmatprep.subr.mxu0 0.0
          %406 = vmatpush1.msra.mxu0 0.0
          %407 = vmatprep.subr.mxu0 0.0
          %408 = vmatpush1.msra.mxu0 0.0
          %409 = vmatprep.subr.mxu0 0.0
          %410 = vmatpush1.msra.mxu0 0.0
          %411 = vmatprep.subr.mxu0 0.0
          %412 = vmatpush1.msra.mxu0 0.0
          %413 = vmatprep.subr.mxu0 0.0
          %414 = vmatpush1.msra.mxu0 0.0
          %415 = vmatprep.subr.mxu0 0.0
          %416 = vmatpush1.msra.mxu0 0.0
          %417 = vmatprep.subr.mxu0 0.0
          %418 = vmatpush1.msra.mxu0 0.0
          %419 = vmatprep.subr.mxu0 0.0
          %420 = vmatpush1.msra.mxu0 0.0
          %421 = vmatprep.subr.mxu0 0.0
          %422 = vmatpush1.msra.mxu0 0.0
          %423 = vmatprep.subr.mxu0 0.0
          %424 = vmatpush1.msra.mxu0 0.0
          %425 = vmatprep.subr.mxu0 0.0
          %426 = vmatpush1.msra.mxu0 0.0
          %427 = vmatprep.subr.mxu0 0.0
          %428 = vmatpush1.msra.mxu0 0.0
          %429 = vmatprep.subr.mxu0 0.0
          %430 = vmatpush1.msra.mxu0 0.0
          %431 = vmatprep.subr.mxu0 0.0
          %432 = vmatpush1.msra.mxu0 0.0
          %433 = vmatprep.subr.mxu0 0.0
          %434 = vmatpush1.msra.mxu0 0.0
          %435 = vmatprep.subr.mxu0 0.0
          %436 = vmatpush1.msra.mxu0 0.0
          %437 = vmatprep.subr.mxu0 0.0
          %438 = vmatpush1.msra.mxu0 0.0
          %439 = vmatprep.subr.mxu0 0.0
          %440 = vmatpush1.msra.mxu0 0.0
          %441 = vmatprep.subr.mxu0 0.0
          %442 = vmatpush1.msra.mxu0 0.0
          %443 = vmatprep.subr.mxu0 0.0
          %444 = vmatpush1.msra.mxu0 0.0
          %445 = vmatprep.subr.mxu0 0.0
          %446 = vmatpush1.msra.mxu0 0.0
          %447 = vmatprep.subr.mxu0 0.0
          %448 = vmatpush1.msra.mxu0 0.0
          %449 = vmatprep.subr.mxu0 0.0
          %450 = vmatpush1.msra.mxu0 0.0
          %451 = vmatprep.mubr.f32.mxu0 0.0
          %452 = vmatmul.mubr.f32.gmra.mrb[0].mxu0 %v378
          %v453 = vpop.f32.mrb[0].mxu0
          %v454 = vadd.f32 0.0, %v453
          %v455 = vpop.f32.mrb[0].mxu0
          %456 = vmatprep.mubr.f32.mxu0 0.0
          %457 = vmatmul.mubr.f32.gmra.mrb[0].mxu0 %v381
          %v458 = vpop.f32.mrb[0].mxu0
          %v459 = vadd.f32 0.0, %v458
          %v460 = vpop.f32.mrb[0].mxu0
          %461 = vdwg.mxu0
          %v462 = vxor.u32 %v454, 2147483648
          %v463 = vxor.u32 %v459, 2147483648
          %v464 = vmul.f32 %v462, 1.442695
          %v465 = vpow.pop %v464
          %v466 = vmul.f32 %v463, 1.442695
          %v467 = vpow.pop %v466
          %v468 = vadd.f32 %v465, 1.0
          %v469 = vadd.f32 %v467, 1.0
          %v470 = vrcp.pop %v468
          %v471 = vmul.f32 1.0, %v470
          %v472 = vrcp.pop %v469
          %v473 = vmul.f32 1.0, %v472
          %vm474 = vcmask 7168
          %475 = vst.msk [vmem:[#allocation2] sm:$0xff] %vm474, %v471
          %476 = vst.msk [vmem:[#allocation2 + $0x8] sm:$0xff] %vm474, %v473
        $region40: #{tpu_custom_call.1} parent=31 // pred_fallthru
          _
        %v477 = vld [vmem:[#allocation2] sm:$0xff]
        %v478 = vld [vmem:[#allocation2 + $0x8] sm:$0xff]
        %v479 = vld [vmem:[%s180] sm:$0xff]
        %v480 = vld [vmem:[%s180 + $0x8] sm:$0xff]
        %v481 = vld [vmem:[%s180 + $0x10] sm:$0xff]
        %v482 = vld [vmem:[%s180 + $0x18] sm:$0xff]
        %484 = vset.pattern.permute.xlu0 0
        %485 = vperm.xlu0 %484, %v477
        %v486 = vpop.permute.xlu0 %485
        %489 = vset.pattern.permute.xlu0 0
        %490 = vperm.xlu0 %489, %v478
        %v491 = vpop.permute.xlu0 %490
        %v493 = vmul.f32 %v486, %v479
        %v494 = vmul.f32 %v486, %v480
        %v495 = vmul.f32 %v491, %v481
        %v496 = vmul.f32 %v491, %v482
        %497 = vst [vmem:[%s202] sm:$0xff] %v493
        %498 = vst [vmem:[%s202 + $0x8] sm:$0xff] %v494
        %499 = vst [vmem:[%s202 + $0x10] sm:$0xff] %v495
        %500 = vst [vmem:[%s202 + $0x18] sm:$0xff] %v496
        %s501 = sand.u32 %s110, 1
        %s502 = scalar_lea.sflag [#allocation5], %s501
        %s503 = sand.u32 %s110, 1
        %s504 = smul.addr %s503, 32
        %s505 = scalar_lea.vmem [#allocation6], %s504
        // Predicated region
        $region41: #{tpu_custom_call.1} parent=31 // pred_check
          %p506 = pneg %p120
        $region42: #{tpu_custom_call.1} parent=31 // pred_check_branch
          %508 = sbr.rel (%p506) target = $region44
        $region43: #{tpu_custom_call.1} parent=31 // pred_region
          %s509 = smul.u32 2, %s25
          %s511 = ssub.s32 512, 512
          %512 = vsyncadd %s502, %s511
          %s513 = smul.addr %s24, 4
          %s514 = sadd.s32 %s509, %s513
          %s515 = smul.addr %s514, 128
          %s516 = scalar_lea.hbm %s3, %s515
          %s517 = sshll.u32 %s505, 4
          %s518 = int_to_ptr.vmem [resolvable:$true] %s517
          %523 = dma.vmem_to_hbm [thread:$0]  %s518, 512, %s516, %s502, 256, 256, 16
        $region44: #{tpu_custom_call.1} parent=31 // pred_fallthru
          _
      $region32: #{tpu_custom_call.1} parent=5 // pred_fallthru
        _
      %p524 = scmp.le.s32.totalorder 2, %s15
      // Predicated region
      $region45: #{tpu_custom_call.1} parent=5 // pred_check
        %p525 = pneg %p524
      $region46: #{tpu_custom_call.1} parent=5 // pred_check_branch
        %527 = sbr.rel (%p525) target = $region48
      $region47: #{tpu_custom_call.1} parent=5 // pred_region
        %s528 = ssub.s32 %s15, 2
        // Predicated region
        $region49: #{tpu_custom_call.1} parent=47 // pred_check
          %p529 = pneg %p126
        $region50: #{tpu_custom_call.1} parent=47 // pred_check_branch
          %531 = sbr.rel (%p529) target = $region52
        $region51: #{tpu_custom_call.1} parent=47 // pred_region
          %s532 = sand.u32 %s111, 1
          %s533 = scalar_lea.sflag [#allocation5], %s532
          %s534 = sand.u32 %s111, 1
          %s535 = smul.addr %s534, 32
          %s536 = scalar_lea.vmem [#allocation6], %s535
          %537 = dma.done %s533, 512
        $region52: #{tpu_custom_call.1} parent=47 // pred_fallthru
          _
      $region48: #{tpu_custom_call.1} parent=5 // pred_fallthru
        _
    $region6: #{tpu_custom_call.1} parent=1 // loop_footer
      %s19 = sadd.s32 1, %s15
    $region7: #{tpu_custom_call.1} parent=1 // loop_footer_branch
      %14 = sbr.rel target = $region3
    $region8: #{tpu_custom_call.1} parent=1 // loop_exit
      _
    %538 = vsyncpa [#allocation4], 1
    %s539 = scalar_lea.sflag [#allocation4], 1
    %540 = vsyncpa %s539, 1
    %541 = vsyncpa [#allocation5], 1
    %s542 = scalar_lea.sflag [#allocation5], 1
    %543 = vsyncpa %s542, 1

</llo_original>
